<compile_context>
chip_gen: v7x
topology: tpu7x:2x2x1
jax: 0.10.0
libtpu: 0.0.40
codegen_flags: <defaults>
</compile_context>

<pallas_src>
import jax
import jax.numpy as jnp
from jax.experimental import pallas as pl
from jax.experimental.pallas import tpu as pltpu


def _turbo_subnet_kernel(w1_ref, w2_ref, w3_ref, le_ref, ls_ref, li_ref, o_ref):
    # Elementwise VPU path; (1, TN) weight tiles broadcast against (TB, TN)
    # LLR tiles. Single fused expression -> one store per element.
    o_ref[...] = (
        w1_ref[...] * le_ref[...]
        - w2_ref[...] * ls_ref[...]
        - w3_ref[...] * li_ref[...]
    )


def _round_up(x, m):
    return ((x + m - 1) // m) * m


def turbo_subnet_forward(w1, w2, w3, L_ext, L_sys, L_int, *, tb=None, tn=None):
    """Pallas wrapper.

    Pads (batch, block_len) up to sublane/lane multiples (8, 128), streams the
    three LLR tensors through VMEM with a tiled 2-D grid, keeps the per-N
    weight tiles resident across batch tiles, and slices the padding off the
    result.  Optional tb/tn override the tile caps (must be multiples of 8 /
    128).
    """
    B, N = L_ext.shape
    assert w1.shape == (1, N) and w2.shape == (1, N) and w3.shape == (1, N)
    assert L_sys.shape == (B, N) and L_int.shape == (B, N)

    # --- layout: sublane (8) / lane (128) alignment -------------------------
    B_pad = _round_up(B, 8)
    N_pad = _round_up(N, 128)

    # --- tile sizing (VMEM-aware: <=1 MiB f32 per tile, 4 streamed arrays x
    #     2 pipeline buffers ~= 8 MiB, safe on v7x's 64 MiB VMEM) ------------
    TB = tb if tb is not None else min(B_pad, 256)
    TN = tn if tn is not None else min(N_pad, 1024)
    assert TB % 8 == 0 and TN % 128 == 0, "tiles must be (8,128)-aligned"

    # Pad arrays to exact tile multiples so every block is full.
    B_full = _round_up(B_pad, TB)
    N_full = _round_up(N_pad, TN)

    def pad2(x, rows, cols):
        return jnp.pad(x, ((0, rows - x.shape[0]), (0, cols - x.shape[1])))

    le = pad2(L_ext, B_full, N_full)
    ls = pad2(L_sys, B_full, N_full)
    li = pad2(L_int, B_full, N_full)
    w1p = pad2(w1, 1, N_full)
    w2p = pad2(w2, 1, N_full)
    w3p = pad2(w3, 1, N_full)

    # Grid: N-tiles outer, batch-tiles inner -> weight block index constant
    # across the inner loop, so the weight tile stays resident in VMEM.
    grid = (N_full // TN, B_full // TB)

    w_spec = pl.BlockSpec((1, TN), lambda j, i: (0, j))    # keyed to N only
    x_spec = pl.BlockSpec((TB, TN), lambda j, i: (i, j))   # streamed LLR tiles

    out = pl.pallas_call(
        _turbo_subnet_kernel,
        out_shape=jax.ShapeDtypeStruct((B_full, N_full), L_ext.dtype),
        grid=grid,
        in_specs=[w_spec, w_spec, w_spec, x_spec, x_spec, x_spec],
        out_specs=x_spec,
        compiler_params=pltpu.CompilerParams(
            dimension_semantics=("parallel", "parallel"),
            vmem_limit_bytes=32 * 1024 * 1024,
        ),
    )(w1p, w2p, w3p, le, ls, li)

    return out[:B, :N]


def init_params(block_len, init_type="random", one_weight=False, seed=0):
    """Deterministic parameter init mirroring Turbo_subnet.__init__."""
    key = jax.random.PRNGKey(seed)
    k1, k2, k3 = jax.random.split(key, 3)
    if init_type == "ones":
        w1 = jnp.ones((1, block_len), jnp.float32)
        w2 = jnp.ones((1, block_len), jnp.float32)
        w3 = jnp.ones((1, block_len), jnp.float32)
    elif init_type == "random":
        w1 = jax.random.uniform(k1, (1, block_len), jnp.float32)
        w2 = jax.random.uniform(k2, (1, block_len), jnp.float32)
        w3 = jax.random.uniform(k3, (1, block_len), jnp.float32)
    elif init_type == "gaussian":
        w1 = 0.001 * jax.random.normal(k1, (1, block_len), jnp.float32)
        w2 = 0.001 * jax.random.normal(k2, (1, block_len), jnp.float32)
        w3 = 0.001 * jax.random.normal(k3, (1, block_len), jnp.float32)
    else:
        raise ValueError("Invalid init type")
    if one_weight:
        w2 = w1
        w3 = w1
    return w1, w2, w3


def _make_llrs(batch, block_len, seed=0):
    key = jax.random.PRNGKey(seed)
    ke, ks, ki = jax.random.split(key, 3)
    L_ext = jax.random.normal(ke, (batch, block_len), jnp.float32)
    L_sys = jax.random.normal(ks, (batch, block_len), jnp.float32)
    L_int = jax.random.normal(ki, (batch, block_len), jnp.float32)
    return L_ext, L_sys, L_int


if __name__ == "__main__":
    # --- demo 1: module-sized small problem (4, 64) -> padded to one (8,128)
    #     tile, grid (1, 1). -------------------------------------------------
    batch, block_len = 4, 64
    w1, w2, w3 = init_params(block_len, init_type="random", one_weight=False, seed=0)
    L_ext, L_sys, L_int = _make_llrs(batch, block_len, seed=0)

    out = turbo_subnet_forward(w1, w2, w3, L_ext, L_sys, L_int)
    out = jax.block_until_ready(out)
    ref = w1 * L_ext - w2 * L_sys - w3 * L_int
    assert out.shape == (batch, block_len)
    assert jnp.allclose(out, ref, atol=1e-6, rtol=1e-6)

    # --- demo 2: exercise the multi-tile grid + padding/slicing path with a
    #     non-128-multiple block_len and small forced tiles -> grid (2, 2). --
    batch2, block_len2 = 16, 200
    w1b, w2b, w3b = init_params(block_len2, init_type="gaussian", seed=1)
    L_ext2, L_sys2, L_int2 = _make_llrs(batch2, block_len2, seed=1)

    out2 = turbo_subnet_forward(w1b, w2b, w3b, L_ext2, L_sys2, L_int2, tb=8, tn=128)
    out2 = jax.block_until_ready(out2)
    ref2 = w1b * L_ext2 - w2b * L_sys2 - w3b * L_int2
    assert out2.shape == (batch2, block_len2)
    assert jnp.allclose(out2, ref2, atol=1e-6, rtol=1e-6)

    print("KERNEL_OK")
</pallas_src>

<mosaic_0001>
module attributes {stable_mosaic.version = 11 : i64} {
  func.func @_turbo_subnet_kernel(%arg0: i32, %arg1: i32, %arg2: memref<1x128xf32, #tpu.memory_space<vmem>>, %arg3: memref<1x128xf32, #tpu.memory_space<vmem>>, %arg4: memref<1x128xf32, #tpu.memory_space<vmem>>, %arg5: memref<8x128xf32, #tpu.memory_space<vmem>>, %arg6: memref<8x128xf32, #tpu.memory_space<vmem>>, %arg7: memref<8x128xf32, #tpu.memory_space<vmem>>, %arg8: memref<8x128xf32, #tpu.memory_space<vmem>>) attributes {dimension_semantics = [#tpu.dimension_semantics<parallel>, #tpu.dimension_semantics<parallel>], iteration_bounds = array<i64: 1, 1>, scalar_prefetch = 0 : i64, scratch_operands = 0 : i64, tpu.core_type = #tpu.core_type<tc>, window_params = [{transform_indices = @transform_0, window_bounds = array<i64: 1, 128>}, {transform_indices = @transform_1, window_bounds = array<i64: 1, 128>}, {transform_indices = @transform_2, window_bounds = array<i64: 1, 128>}, {transform_indices = @transform_3, window_bounds = array<i64: 8, 128>}, {transform_indices = @transform_4, window_bounds = array<i64: 8, 128>}, {transform_indices = @transform_5, window_bounds = array<i64: 8, 128>}, {transform_indices = @transform_6, window_bounds = array<i64: 8, 128>}]} {
    %c0 = arith.constant 0 : index
    %c0_0 = arith.constant 0 : index
    %0 = vector.load %arg2[%c0, %c0_0] : memref<1x128xf32, #tpu.memory_space<vmem>>, vector<1x128xf32>
    %c0_1 = arith.constant 0 : index
    %c0_2 = arith.constant 0 : index
    %1 = vector.load %arg5[%c0_1, %c0_2] : memref<8x128xf32, #tpu.memory_space<vmem>>, vector<8x128xf32>
    %2 = vector.broadcast %0 : vector<1x128xf32> to vector<8x128xf32>
    %3 = arith.mulf %2, %1 : vector<8x128xf32>
    %c0_3 = arith.constant 0 : index
    %c0_4 = arith.constant 0 : index
    %4 = vector.load %arg3[%c0_3, %c0_4] : memref<1x128xf32, #tpu.memory_space<vmem>>, vector<1x128xf32>
    %c0_5 = arith.constant 0 : index
    %c0_6 = arith.constant 0 : index
    %5 = vector.load %arg6[%c0_5, %c0_6] : memref<8x128xf32, #tpu.memory_space<vmem>>, vector<8x128xf32>
    %6 = vector.broadcast %4 : vector<1x128xf32> to vector<8x128xf32>
    %7 = arith.mulf %6, %5 : vector<8x128xf32>
    %8 = arith.subf %3, %7 : vector<8x128xf32>
    %c0_7 = arith.constant 0 : index
    %c0_8 = arith.constant 0 : index
    %9 = vector.load %arg4[%c0_7, %c0_8] : memref<1x128xf32, #tpu.memory_space<vmem>>, vector<1x128xf32>
    %c0_9 = arith.constant 0 : index
    %c0_10 = arith.constant 0 : index
    %10 = vector.load %arg7[%c0_9, %c0_10] : memref<8x128xf32, #tpu.memory_space<vmem>>, vector<8x128xf32>
    %11 = vector.broadcast %9 : vector<1x128xf32> to vector<8x128xf32>
    %12 = arith.mulf %11, %10 : vector<8x128xf32>
    %13 = arith.subf %8, %12 : vector<8x128xf32>
    %c0_11 = arith.constant 0 : index
    %c0_12 = arith.constant 0 : index
    %14 = vector.load %arg8[%c0_11, %c0_12] : memref<8x128xf32, #tpu.memory_space<vmem>>, vector<8x128xf32>
    tpu.vector_store %arg8[%c0_11, %c0_12], %13 {strides = array<i32>} : memref<8x128xf32, #tpu.memory_space<vmem>>, vector<8x128xf32>,
    return
  }
  func.func @transform_0(%arg0: i32, %arg1: i32) -> (i32, i32) {
    %c0_i32 = arith.constant 0 : i32
    %c0_i32_0 = arith.constant 0 : i32
    return %c0_i32, %arg0 : i32, i32
  }
  func.func @transform_1(%arg0: i32, %arg1: i32) -> (i32, i32) {
    %c0_i32 = arith.constant 0 : i32
    %c0_i32_0 = arith.constant 0 : i32
    return %c0_i32, %arg0 : i32, i32
  }
  func.func @transform_2(%arg0: i32, %arg1: i32) -> (i32, i32) {
    %c0_i32 = arith.constant 0 : i32
    %c0_i32_0 = arith.constant 0 : i32
    return %c0_i32, %arg0 : i32, i32
  }
  func.func @transform_3(%arg0: i32, %arg1: i32) -> (i32, i32) {
    %c0_i32 = arith.constant 0 : i32
    return %arg1, %arg0 : i32, i32
  }
  func.func @transform_4(%arg0: i32, %arg1: i32) -> (i32, i32) {
    %c0_i32 = arith.constant 0 : i32
    return %arg1, %arg0 : i32, i32
  }
  func.func @transform_5(%arg0: i32, %arg1: i32) -> (i32, i32) {
    %c0_i32 = arith.constant 0 : i32
    return %arg1, %arg0 : i32, i32
  }
  func.func @transform_6(%arg0: i32, %arg1: i32) -> (i32, i32) {
    %c0_i32 = arith.constant 0 : i32
    return %arg1, %arg0 : i32, i32
  }
}

</mosaic_0001>

<llo_original>
// kernel: tpu_custom_call.1
$region0: #{tpu_custom_call.1}
  #allocation0 [shape = 'u32[]', space=smem, size = 0x4, offset = 0x4, fixed_abs, tag = 'smem constant byte address 0x4 - core index']
  #allocation1 [shape = 'u32[144,128]{1,0:T(1,128)}', space=vmem, size = 0x12000, scoped, tag = 'internal scratch']
  %s0 = inlined_call_operand.hbm [shape: f32[1,128], index: 0, kind: input, shape index: {}]
  %s1 = inlined_call_operand.vmem [shape: f32[1,128], index: 1, kind: input, shape index: {}]
  %s2 = inlined_call_operand.vmem [shape: f32[1,128], index: 2, kind: input, shape index: {}]
  %s3 = inlined_call_operand.vmem [shape: f32[8,128], index: 3, kind: input, shape index: {}]
  %s4 = inlined_call_operand.hbm [shape: f32[8,128], index: 4, kind: input, shape index: {}]
  %s5 = inlined_call_operand.vmem [shape: f32[8,128], index: 5, kind: input, shape index: {}]
  %s6 = inlined_call_operand.hbm [shape: f32[8,128], index: 6, kind: output, shape index: {}]
  %s7 = sld [smem:[#allocation0]]
  $region42: #{tpu_custom_call.1} parent=0
    _
  %s9 = ssub.s32 1, %s7
  %s10 = scalar_select 0, %s9, %s7
  $region1: #{tpu_custom_call.1} parent=0
    #allocation2 [shape = 'u8[512]{0}', space=vmem, size = 0x400, scoped, tag = 'input window, operand 0, single buffered']
    #allocation3 [shape = 's32[1]{0}', space=sflag, size = 0x4, scoped, tag = 'scoped memory for tpu_custom_call.1']
    #allocation4 [shape = 's32[1]{0}', space=sflag, size = 0x4, scoped, tag = 'scoped memory for tpu_custom_call.1']
    #allocation5 [shape = 'u8[4096]{0}', space=vmem, size = 0x1000, scoped, tag = 'input window, operand 4, single buffered']
    #allocation6 [shape = 's32[1]{0}', space=sflag, size = 0x4, scoped, tag = 'scoped memory for tpu_custom_call.1']
    #allocation7 [shape = 'u8[4096]{0}', space=vmem, size = 0x1000, scoped, tag = 'output window, operand 0, single buffered']
    %11 = vsyncpa [#allocation3], 0
    %12 = vsyncpa [#allocation6], 0
    %13 = vsyncpa [#allocation4], 0
    // Predicated region
    $region2: #{tpu_custom_call.1} parent=1 // pred_check
      _
    $region3: #{tpu_custom_call.1} parent=1 // pred_check_branch
      %15 = sbr.rel (0) target = $region5
    $region4: #{tpu_custom_call.1} parent=1 // pred_region
      %s17 = ssub.s32 16, 16
      %18 = vsyncadd [#allocation3], %s17
      %s20 = sshll.u32 [#allocation2], 4
      %s21 = int_to_ptr.vmem [resolvable:$true] %s20
      %23 = dma.hbm_to_vmem [thread:$0]  %s0, 16, %s21, [#allocation3]
    $region5: #{tpu_custom_call.1} parent=1 // pred_fallthru
      _
    // Predicated region
    $region6: #{tpu_custom_call.1} parent=1 // pred_check
      _
    $region7: #{tpu_custom_call.1} parent=1 // pred_check_branch
      %25 = sbr.rel (0) target = $region9
    $region8: #{tpu_custom_call.1} parent=1 // pred_region
      _
    $region9: #{tpu_custom_call.1} parent=1 // pred_fallthru
      _
    // Predicated region
    $region10: #{tpu_custom_call.1} parent=1 // pred_check
      _
    $region11: #{tpu_custom_call.1} parent=1 // pred_check_branch
      %27 = sbr.rel (0) target = $region13
    $region12: #{tpu_custom_call.1} parent=1 // pred_region
      _
    $region13: #{tpu_custom_call.1} parent=1 // pred_fallthru
      _
    // Predicated region
    $region14: #{tpu_custom_call.1} parent=1 // pred_check
      _
    $region15: #{tpu_custom_call.1} parent=1 // pred_check_branch
      %29 = sbr.rel (0) target = $region17
    $region16: #{tpu_custom_call.1} parent=1 // pred_region
      _
    $region17: #{tpu_custom_call.1} parent=1 // pred_fallthru
      _
    // Predicated region
    $region18: #{tpu_custom_call.1} parent=1 // pred_check
      _
    $region19: #{tpu_custom_call.1} parent=1 // pred_check_branch
      %31 = sbr.rel (0) target = $region21
    $region20: #{tpu_custom_call.1} parent=1 // pred_region
      %s33 = ssub.s32 128, 128
      %34 = vsyncadd [#allocation6], %s33
      %s36 = sshll.u32 [#allocation5], 4
      %s37 = int_to_ptr.vmem [resolvable:$true] %s36
      %39 = dma.hbm_to_vmem [thread:$0]  %s4, 128, %s37, [#allocation6]
    $region21: #{tpu_custom_call.1} parent=1 // pred_fallthru
      _
    // Predicated region
    $region22: #{tpu_custom_call.1} parent=1 // pred_check
      _
    $region23: #{tpu_custom_call.1} parent=1 // pred_check_branch
      %41 = sbr.rel (0) target = $region25
    $region24: #{tpu_custom_call.1} parent=1 // pred_region
      _
    $region25: #{tpu_custom_call.1} parent=1 // pred_fallthru
      _
    // Predicated region
    $region26: #{tpu_custom_call.1} parent=1 // pred_check
      _
    $region27: #{tpu_custom_call.1} parent=1 // pred_check_branch
      %43 = sbr.rel (0) target = $region29
    $region28: #{tpu_custom_call.1} parent=1 // pred_region
      %44 = dma.done [#allocation3], 16
    $region29: #{tpu_custom_call.1} parent=1 // pred_fallthru
      _
    // Predicated region
    $region30: #{tpu_custom_call.1} parent=1 // pred_check
      _
    $region31: #{tpu_custom_call.1} parent=1 // pred_check_branch
      %46 = sbr.rel (0) target = $region33
    $region32: #{tpu_custom_call.1} parent=1 // pred_region
      %47 = dma.done [#allocation6], 128
    $region33: #{tpu_custom_call.1} parent=1 // pred_fallthru
      _
    %v48 = vld [vmem:[#allocation2] sm:$0x1]
    %v49 = vld [vmem:[%s3] sm:$0xff]
    %v51 = vlaneseq
    %v52 = vshrl.u32 %v51, 7
    %v53 = vsub.s32 0, %v52
    %v54 = vrot.slane %v48, %v53
    %v56 = vmul.f32 %v54, %v49
    %v57 = vld [vmem:[%s1] sm:$0x1]
    %v58 = vld [vmem:[#allocation5] sm:$0xff]
    %v60 = vlaneseq
    %v61 = vshrl.u32 %v60, 7
    %v62 = vsub.s32 0, %v61
    %v63 = vrot.slane %v57, %v62
    %v65 = vmul.f32 %v63, %v58
    %v66 = vsub.f32 %v56, %v65
    %v67 = vld [vmem:[%s2] sm:$0x1]
    %v68 = vld [vmem:[%s5] sm:$0xff]
    %v70 = vlaneseq
    %v71 = vshrl.u32 %v70, 7
    %v72 = vsub.s32 0, %v71
    %v73 = vrot.slane %v67, %v72
    %v75 = vmul.f32 %v73, %v68
    %v76 = vsub.f32 %v66, %v75
    %77 = vst [vmem:[#allocation7] sm:$0xff] %v76
    // Predicated region
    $region34: #{tpu_custom_call.1} parent=1 // pred_check
      _
    $region35: #{tpu_custom_call.1} parent=1 // pred_check_branch
      %79 = sbr.rel (0) target = $region37
    $region36: #{tpu_custom_call.1} parent=1 // pred_region
      %s81 = ssub.s32 128, 128
      %82 = vsyncadd [#allocation4], %s81
      %s84 = sshll.u32 [#allocation7], 4
      %s85 = int_to_ptr.vmem [resolvable:$true] %s84
      %87 = dma.vmem_to_hbm [thread:$0]  %s85, 128, %s6, [#allocation4]
    $region37: #{tpu_custom_call.1} parent=1 // pred_fallthru
      _
    // Predicated region
    $region38: #{tpu_custom_call.1} parent=1 // pred_check
      _
    $region39: #{tpu_custom_call.1} parent=1 // pred_check_branch
      %89 = sbr.rel (0) target = $region41
    $region40: #{tpu_custom_call.1} parent=1 // pred_region
      %90 = dma.done [#allocation4], 128
    $region41: #{tpu_custom_call.1} parent=1 // pred_fallthru
      _
    %91 = vsyncpa [#allocation3], 1
    %92 = vsyncpa [#allocation6], 1
    %93 = vsyncpa [#allocation4], 1

</llo_original>
